<compile_context>
chip_gen: v6e
topology: v6e:2x2x1
jax: 0.10.0
libtpu: 0.0.40
codegen_flags: <defaults>
</compile_context>

<pallas_src>
import functools

import jax
import jax.numpy as jnp
import numpy as np
from jax.experimental import pallas as pl
from jax.experimental.pallas import tpu as pltpu

PATCH = 8          # stride-8 patch embedding (x8 downsample in the backbone)
C_REG = 32         # registration feature channels
CP = 128           # channel dim padded to the 128-lane MXU granule
NEG = -1e30        # additive mask penalty (finite; -1e30 + -1e30 stays finite)
NEG_INIT = -3.0e38  # colmax accumulator init


# ----------------------------------------------------------------------------
# Fused kernel: backbone (patch embed + folded SA head + folded penalties)
# + mutual-NN matching.
#
# grid = (T,)  (T = vi row tiles).  ir features are computed once at t==0 into
# VMEM scratch and stay resident.  Each tile computes the vi backbone and the
# conf tile ONCE, stores rowmax/argmax, and accumulates the per-ir colmax.
# The last step resolves matches from (rowmax, argmax, colmax) only.
# ----------------------------------------------------------------------------
def _semla_kernel(patchT_vi_ref, patch_ir_ref, w_ref, wT_ref, b_row_ref,
                  b_col_ref,
                  sa_vi_ref, sa_ir_ref, jidx_ref,
                  reg_ir_scr, colmax_scr, rowmax_scr, argmax_scr,
                  *, thr, tile_l, n_tiles):
    t = pl.program_id(0)
    S = patch_ir_ref.shape[0]

    # ---- once (t == 0): ir backbone -> VMEM scratch (never leaves VMEM) ----
    @pl.when(t == 0)
    def _():
        reg_ir = jnp.dot(patch_ir_ref[...], w_ref[...],
                         preferred_element_type=jnp.float32) + b_row_ref[...]
        sa_logit = reg_ir[:, C_REG:C_REG + 1]            # static slice (S, 1)
        sig_ir = jax.nn.sigmoid(sa_logit)
        sa_ir_ref[...] = sig_ir
        neg_ir = jnp.where(sig_ir > thr, 0.0, NEG)       # (S, 1)
        lane = jax.lax.broadcasted_iota(jnp.int32, reg_ir.shape, 1)
        # lane C_REG carries the ir validity penalty (vi row C_REG is 1.0);
        # lane C_REG+1 is a constant 1.0 (vi row C_REG+1 carries neg_vi);
        # lanes > C_REG+1 are exactly zero (zero weight columns / bias).
        stuffed = jnp.where(lane == C_REG, neg_ir,
                            jnp.where(lane == C_REG + 1, 1.0, reg_ir))
        reg_ir_scr[...] = stuffed.astype(jnp.bfloat16)
        colmax_scr[...] = jnp.full(colmax_scr.shape, NEG_INIT, jnp.float32)

    # ---- per tile (computed exactly once): vi backbone, (CP, tile_l) -------
    reg_viT = jnp.dot(wT_ref[...], patchT_vi_ref[...],
                      preferred_element_type=jnp.float32) + b_col_ref[...]
    sa_logit_vi = reg_viT[C_REG:C_REG + 1, :]            # static slice (1, tl)
    sig_vi = jax.nn.sigmoid(sa_logit_vi)
    sa_vi_ref[...] = sig_vi                              # lane-dense output
    neg_vi = jnp.where(sig_vi > thr, 0.0, NEG)           # (1, tile_l)
    sub = jax.lax.broadcasted_iota(jnp.int32, reg_viT.shape, 0)
    stuffed_vi = jnp.where(sub == C_REG, 1.0,
                           jnp.where(sub == C_REG + 1, neg_vi, reg_viT))

    # conf tile (S, tile_l): bf16 operands, f32 accumulation; both validity
    # penalties come out of the MXU (spare lanes), no VPU adds needed.
    conf = jnp.dot(reg_ir_scr[...], stuffed_vi.astype(jnp.bfloat16),
                   preferred_element_type=jnp.float32)

    rowmax = jnp.max(conf, axis=0, keepdims=True)        # per-vi max over ir
    iota_s = jax.lax.broadcasted_iota(jnp.int32, conf.shape, 0)
    # first ir index achieving the per-vi max (robust argmax lowering)
    argmax = jnp.min(jnp.where(conf == rowmax, iota_s, S),
                     axis=0, keepdims=True)
    colmax_scr[...] = jnp.maximum(colmax_scr[...],
                                  jnp.max(conf, axis=1, keepdims=True))
    rowmax_scr[pl.ds(t, 1), :] = rowmax
    argmax_scr[pl.ds(t, 1), :] = argmax

    # ---- finalize at the last tile: resolve MNN without any recompute ------
    @pl.when(t == n_tiles - 1)
    def _():
        colmax = colmax_scr[...]                         # (S, 1), complete now
        for c in range(n_tiles):                         # static chunk loop
            rmax = rowmax_scr[pl.ds(c, 1), :]            # (1, tile_l)
            amax = argmax_scr[pl.ds(c, 1), :]            # (1, tile_l) int32
            iota = jax.lax.broadcasted_iota(jnp.int32, (S, tile_l), 0)
            # exact f32 gather colmax[amax] via one-hot select + sublane sum
            gathered = jnp.sum(jnp.where(iota == amax, colmax, 0.0),
                               axis=0, keepdims=True)
            # colmax[amax] >= rmax always; equality <=> mutual nearest neighbor
            match = (rmax > 0.0) & (rmax >= gathered)
            jidx_ref[:, c * tile_l:(c + 1) * tile_l] = jnp.where(match, amax,
                                                                 -1)


def semla_fused_call(patchT_vi, patch_ir, w_comb, w_combT, b_row, b_col, *,
                     thr, tile_l, vmem_limit):
    P, L = patchT_vi.shape
    S = patch_ir.shape[0]
    T = L // tile_l
    kernel = functools.partial(_semla_kernel, thr=float(thr), tile_l=tile_l,
                               n_tiles=T)
    return pl.pallas_call(
        kernel,
        grid=(T,),
        in_specs=[
            pl.BlockSpec((P, tile_l), lambda t: (0, t)),   # vi patches^T
            pl.BlockSpec((S, P), lambda t: (0, 0)),        # ir patches (resident)
            pl.BlockSpec((P, CP), lambda t: (0, 0)),       # W     (resident)
            pl.BlockSpec((CP, P), lambda t: (0, 0)),       # W^T   (resident)
            pl.BlockSpec((1, CP), lambda t: (0, 0)),       # bias (row form)
            pl.BlockSpec((CP, 1), lambda t: (0, 0)),       # bias (col form)
        ],
        out_specs=(
            pl.BlockSpec((1, tile_l), lambda t: (0, t)),   # sa_vi, lane-dense
            pl.BlockSpec((S, 1), lambda t: (0, 0)),        # sa_ir, resident
            pl.BlockSpec((1, L), lambda t: (0, 0)),        # jidx,  resident
        ),
        out_shape=(
            jax.ShapeDtypeStruct((1, L), jnp.float32),
            jax.ShapeDtypeStruct((S, 1), jnp.float32),
            jax.ShapeDtypeStruct((1, L), jnp.int32),
        ),
        scratch_shapes=[
            pltpu.VMEM((S, CP), jnp.bfloat16),   # ir features + folded penalties
            pltpu.VMEM((S, 1), jnp.float32),     # per-ir column-max accumulator
            pltpu.VMEM((T, tile_l), jnp.float32),  # per-vi row max
            pltpu.VMEM((T, tile_l), jnp.int32),    # per-vi row argmax
        ],
        compiler_params=pltpu.CompilerParams(
            # single sequential axis (colmax accumulation + finalize at end)
            dimension_semantics=("arbitrary",),
            vmem_limit_bytes=vmem_limit),
    )(patchT_vi, patch_ir, w_comb, w_combT, b_row, b_col)


# ----------------------------------------------------------------------------
# Wrapper glue (parameter folding, patch extraction, tiny XLA upsample)
# ----------------------------------------------------------------------------
def init_params(key, in_ch=1):
    k1, k2, k3, k4 = jax.random.split(key, 4)
    P = in_ch * PATCH * PATCH
    w_reg = jax.random.normal(k1, (P, C_REG), jnp.float32) * (1.0 / P ** 0.5)
    b_reg = jax.random.normal(k2, (1, C_REG), jnp.float32) * 0.01
    w_sa = jax.random.normal(k3, (1, C_REG), jnp.float32) * (1.0 / C_REG ** 0.5)
    b_sa = jax.random.normal(k4, (1, 1), jnp.float32) * 0.01
    return w_reg, b_reg, w_sa, b_sa


def _fold_params(w_reg, b_reg, w_sa, b_sa):
    """Fold the SA head AND the conf temperature into the patch-embed matmul.

    Feature columns 0..C_REG-1 carry the per-operand sqrt(1/(C*0.1)) scale so
    no scaling is needed inside the kernel; the SA column stays unscaled.
    Columns C_REG+1..127 stay exactly zero (spare MXU lanes used for the
    validity penalties inside the kernel).
    """
    P = w_reg.shape[0]
    scale = 1.0 / float(np.sqrt(C_REG * 0.1))   # per operand; product = 1/(C*0.1)
    w_comb = jnp.zeros((P, CP), jnp.float32)
    w_comb = w_comb.at[:, :C_REG].set(w_reg * scale)
    w_comb = w_comb.at[:, C_REG:C_REG + 1].set(w_reg @ w_sa.T)
    b_row = jnp.zeros((1, CP), jnp.float32)
    b_row = b_row.at[:, :C_REG].set(b_reg * scale)
    b_row = b_row.at[:, C_REG:C_REG + 1].set(b_reg @ w_sa.T + b_sa)
    return w_comb, b_row


def _extract_patches(img):
    n, c, H, W = img.shape
    h, w = H // PATCH, W // PATCH
    x = img.reshape(n, c, h, PATCH, w, PATCH)
    x = jnp.transpose(x, (0, 2, 4, 1, 3, 5))          # n h w c ph pw
    return x.reshape(n * h * w, c * PATCH * PATCH)


def _interp_matrix(n_in, n_out):
    # bilinear, align_corners=True:  src = dst * (n_in - 1) / (n_out - 1)
    dst = np.arange(n_out, dtype=np.float64)
    src = dst * (n_in - 1) / max(n_out - 1, 1)
    i0 = np.clip(np.floor(src).astype(np.int64), 0, max(n_in - 2, 0))
    frac = (src - i0).astype(np.float32)
    W = np.zeros((n_out, n_in), np.float32)
    rows = np.arange(n_out)
    W[rows, i0] += 1.0 - frac
    W[rows, np.minimum(i0 + 1, n_in - 1)] += frac
    return jnp.asarray(W)


def _vmem_budget_bytes():
    """Device-aware scoped VMEM budget: ~48 MiB on v7x, ~96 MiB on v5e/v6e."""
    try:
        cap = int(pltpu.get_tpu_info().vmem_capacity_bytes)
    except Exception:
        cap = 64 * 1024 * 1024
    return max(32 << 20, min((cap * 3) // 4, 112 << 20))


def _pick_tile(L, S, budget):
    """Largest lane-aligned vi tile whose live intermediates fit the budget."""
    if L <= 128:
        return L
    cands = [c for c in (2048, 1024, 768, 512, 384, 256, 128)
             if c <= L and L % c == 0]
    if not cands:
        return L                      # single full-width tile
    resident = S * (CP * 2 + 512) + L * 8        # ir scratch + colmax + rowmax/argmax
    for c in cands:
        live = S * c * 16 + CP * c * 12          # conf + epilogue temps + vi feats
        if live + resident <= budget // 2:       # headroom for pipelined inputs
            return c
    return cands[-1]


def semla_forward(params, img_vi, img_ir, matchmode):
    if matchmode == 'semantic':
        thr = 0.5
    elif matchmode == 'scene':
        thr = 0.0
    else:
        raise ValueError(matchmode)

    w_reg, b_reg, w_sa, b_sa = params
    n, c, H, W = img_vi.shape
    assert n == 1  # TODO(synk): batch>1 matching would loop over pairs here.
    assert img_ir.shape == img_vi.shape
    h, w = H // PATCH, W // PATCH
    L = h * w

    w_comb, b_row = _fold_params(w_reg, b_reg, w_sa, b_sa)
    w_comb_bf = w_comb.astype(jnp.bfloat16)
    w_combT_bf = w_comb.T.astype(jnp.bfloat16)
    b_col = b_row.T

    patches_vi = _extract_patches(img_vi)                 # (L, P)
    patches_ir = _extract_patches(img_ir)                 # (S, P)
    patchT_vi = patches_vi.T.astype(jnp.bfloat16)         # (P, L): pre-transposed
    patch_ir_bf = patches_ir.astype(jnp.bfloat16)
    S = patches_ir.shape[0]

    budget = _vmem_budget_bytes()
    tile_l = _pick_tile(L, S, budget)

    sa_vi_row, sa_ir_col, jidx_row = semla_fused_call(
        patchT_vi, patch_ir_bf, w_comb_bf, w_combT_bf, b_row, b_col,
        thr=thr, tile_l=tile_l, vmem_limit=budget)

    feat_sa_vi = sa_vi_row.reshape(n, 1, h, w)
    feat_sa_ir = sa_ir_col.reshape(n, 1, h, w)

    # Dynamic-shape index extraction (host-side glue, like torch.where); not
    # jittable -- jit users should consume (jidx >= 0, jidx) directly instead.
    jidx = jidx_row.reshape(L)
    i_ids = jnp.where(jidx >= 0)[0].astype(jnp.int32)
    j_ids = jidx[i_ids]
    w_sp = feat_sa_vi.shape[3]
    mkpts0 = jnp.stack([i_ids % w_sp, i_ids // w_sp], axis=1) * 8
    mkpts1 = jnp.stack([j_ids % w_sp, j_ids // w_sp], axis=1) * 8

    # Bilinear x8 upsample (align_corners=True) == Wy @ sa @ Wx^T.  Below MXU
    # granule at these sizes, so left to plain XLA per the perf review.
    Wy = _interp_matrix(h, H)
    Wx = _interp_matrix(w, W)
    sa_ir_up = (Wy @ feat_sa_ir[0, 0] @ Wx.T).reshape(1, 1, H, W)

    return mkpts0, mkpts1, feat_sa_vi, feat_sa_ir, sa_ir_up


if __name__ == "__main__":
    key = jax.random.PRNGKey(0)
    k_img, k_noise, k_par = jax.random.split(key, 3)

    # shapes consistent with the x8 downsample/upsample in the module
    img_vi = jax.random.uniform(k_img, (1, 1, 32, 32), jnp.float32)
    img_ir = img_vi * 0.9 + 0.1 * jax.random.uniform(k_noise, (1, 1, 32, 32),
                                                     jnp.float32)
    params = init_params(k_par, in_ch=1)

    outs = semla_forward(params, img_vi, img_ir, matchmode='scene')
    outs = jax.block_until_ready(outs)

    mkpts0, mkpts1, feat_sa_vi, feat_sa_ir, sa_ir_up = outs
    assert feat_sa_vi.shape == (1, 1, 4, 4)
    assert feat_sa_ir.shape == (1, 1, 4, 4)
    assert sa_ir_up.shape == (1, 1, 32, 32)
    assert mkpts0.shape == mkpts1.shape and mkpts0.shape[1] == 2
    print("KERNEL_OK")
</pallas_src>

<mosaic_0001>
module attributes {stable_mosaic.version = 11 : i64} {
  func.func @_semla_kernel(%arg0: i32, %arg1: memref<64x16xbf16, #tpu.memory_space<vmem>>, %arg2: memref<16x64xbf16, #tpu.memory_space<vmem>>, %arg3: memref<64x128xbf16, #tpu.memory_space<vmem>>, %arg4: memref<128x64xbf16, #tpu.memory_space<vmem>>, %arg5: memref<1x128xf32, #tpu.memory_space<vmem>>, %arg6: memref<128x1xf32, #tpu.memory_space<vmem>>, %arg7: memref<1x16xf32, #tpu.memory_space<vmem>>, %arg8: memref<16x1xf32, #tpu.memory_space<vmem>>, %arg9: memref<1x16xi32, #tpu.memory_space<vmem>>, %arg10: memref<16x128xbf16, #tpu.memory_space<vmem>>, %arg11: memref<16x1xf32, #tpu.memory_space<vmem>>, %arg12: memref<1x16xf32, #tpu.memory_space<vmem>>, %arg13: memref<1x16xi32, #tpu.memory_space<vmem>>) attributes {dimension_semantics = [#tpu.dimension_semantics<arbitrary>], iteration_bounds = array<i64: 1>, scalar_prefetch = 0 : i64, scratch_operands = 4 : i64, tpu.core_type = #tpu.core_type<tc>, window_params = [{transform_indices = @transform_0, window_bounds = array<i64: 64, 16>}, {pipeline_mode = #tpu.pipeline_mode<synchronous>, transform_indices = @transform_1, window_bounds = array<i64: 16, 64>}, {pipeline_mode = #tpu.pipeline_mode<synchronous>, transform_indices = @transform_2, window_bounds = array<i64: 64, 128>}, {pipeline_mode = #tpu.pipeline_mode<synchronous>, transform_indices = @transform_3, window_bounds = array<i64: 128, 64>}, {pipeline_mode = #tpu.pipeline_mode<synchronous>, transform_indices = @transform_4, window_bounds = array<i64: 1, 128>}, {pipeline_mode = #tpu.pipeline_mode<synchronous>, transform_indices = @transform_5, window_bounds = array<i64: 128, 1>}, {transform_indices = @transform_6, window_bounds = array<i64: 1, 16>}, {pipeline_mode = #tpu.pipeline_mode<synchronous>, transform_indices = @transform_7, window_bounds = array<i64: 16, 1>}, {pipeline_mode = #tpu.pipeline_mode<synchronous>, transform_indices = @transform_8, window_bounds = array<i64: 1, 16>}]} {
    %c0_i32 = arith.constant 0 : i32
    %0 = arith.cmpi eq, %arg0, %c0_i32 : i32
    %1 = arith.extui %0 : i1 to i32
    %c0_i32_0 = arith.constant 0 : i32
    %2 = arith.cmpi ne, %1, %c0_i32_0 : i32
    scf.if %2 {
      %c0_27 = arith.constant 0 : index
      %c0_28 = arith.constant 0 : index
      %55 = vector.load %arg2[%c0_27, %c0_28] : memref<16x64xbf16, #tpu.memory_space<vmem>>, vector<16x64xbf16>
      %c0_29 = arith.constant 0 : index
      %c0_30 = arith.constant 0 : index
      %56 = vector.load %arg3[%c0_29, %c0_30] : memref<64x128xbf16, #tpu.memory_space<vmem>>, vector<64x128xbf16>
      %cst_31 = arith.constant dense<0.000000e+00> : vector<16x128xf32>
      %57 = tpu.matmul %55, %56, %cst_31 {dimension_numbers = #tpu.dot_dimension_numbers<[1], [0], [0], [1], [0, 0, 1, 1], [], []>} : vector<16x64xbf16>, vector<64x128xbf16>, vector<16x128xf32> -> vector<16x128xf32>
      %c0_32 = arith.constant 0 : index
      %c0_33 = arith.constant 0 : index
      %58 = vector.load %arg5[%c0_32, %c0_33] : memref<1x128xf32, #tpu.memory_space<vmem>>, vector<1x128xf32>
      %59 = vector.broadcast %58 : vector<1x128xf32> to vector<16x128xf32>
      %60 = arith.addf %57, %59 : vector<16x128xf32>
      %61 = vector.extract_strided_slice %60 {offsets = [0, 32], sizes = [16, 1], strides = [1, 1]} : vector<16x128xf32> to vector<16x1xf32>
      %62 = arith.negf %61 : vector<16x1xf32>
      %63 = math.exp %62 : vector<16x1xf32>
      %cst_34 = arith.constant 1.000000e+00 : f32
      %64 = vector.broadcast %cst_34 : f32 to vector<16x1xf32>
      %65 = arith.addf %64, %63 : vector<16x1xf32>
      %66 = arith.divf %64, %65 : vector<16x1xf32>
      %c0_35 = arith.constant 0 : index
      %c0_36 = arith.constant 0 : index
      %67 = vector.load %arg8[%c0_35, %c0_36] : memref<16x1xf32, #tpu.memory_space<vmem>>, vector<16x1xf32>
      tpu.vector_store %arg8[%c0_35, %c0_36], %66 {strides = array<i32>} : memref<16x1xf32, #tpu.memory_space<vmem>>, vector<16x1xf32>,
      %cst_37 = arith.constant 0.000000e+00 : f32
      %68 = vector.broadcast %cst_37 : f32 to vector<16x1xf32>
      %69 = arith.cmpf ogt, %66, %68 : vector<16x1xf32>
      %cst_38 = arith.constant 0.000000e+00 : f32
      %cst_39 = arith.constant -1.000000e+30 : f32
      %70 = vector.broadcast %cst_38 : f32 to vector<16x1xf32>
      %71 = vector.broadcast %cst_39 : f32 to vector<16x1xf32>
      %72 = arith.select %69, %70, %71 : vector<16x1xi1>, vector<16x1xf32>
      %73 = tpu.iota {dimensions = array<i32: 1>} : vector<16x128xi32>
      %c32_i32_40 = arith.constant 32 : i32
      %74 = vector.broadcast %c32_i32_40 : i32 to vector<16x128xi32>
      %75 = arith.cmpi eq, %73, %74 : vector<16x128xi32>
      %c33_i32_41 = arith.constant 33 : i32
      %76 = vector.broadcast %c33_i32_41 : i32 to vector<16x128xi32>
      %77 = arith.cmpi eq, %73, %76 : vector<16x128xi32>
      %cst_42 = arith.constant 1.000000e+00 : f32
      %78 = vector.broadcast %cst_42 : f32 to vector<16x128xf32>
      %79 = arith.select %77, %78, %60 : vector<16x128xi1>, vector<16x128xf32>
      %80 = vector.shape_cast %72 : vector<16x1xf32> to vector<16x1xf32>
      %81 = vector.broadcast %80 : vector<16x1xf32> to vector<16x128xf32>
      %82 = arith.select %75, %81, %79 : vector<16x128xi1>, vector<16x128xf32>
      %83 = arith.truncf %82 : vector<16x128xf32> to vector<16x128xbf16>
      %c0_43 = arith.constant 0 : index
      %c0_44 = arith.constant 0 : index
      %84 = vector.load %arg10[%c0_43, %c0_44] : memref<16x128xbf16, #tpu.memory_space<vmem>>, vector<16x128xbf16>
      tpu.vector_store %arg10[%c0_43, %c0_44], %83 {strides = array<i32>} : memref<16x128xbf16, #tpu.memory_space<vmem>>, vector<16x128xbf16>,
      %cst_45 = arith.constant -3.000000e+38 : f32
      %85 = vector.broadcast %cst_45 : f32 to vector<16x1xf32>
      %c0_46 = arith.constant 0 : index
      %c0_47 = arith.constant 0 : index
      %86 = vector.load %arg11[%c0_46, %c0_47] : memref<16x1xf32, #tpu.memory_space<vmem>>, vector<16x1xf32>
      tpu.vector_store %arg11[%c0_46, %c0_47], %85 {strides = array<i32>} : memref<16x1xf32, #tpu.memory_space<vmem>>, vector<16x1xf32>,
    } else {
    }
    %c0 = arith.constant 0 : index
    %c0_1 = arith.constant 0 : index
    %3 = vector.load %arg4[%c0, %c0_1] : memref<128x64xbf16, #tpu.memory_space<vmem>>, vector<128x64xbf16>
    %c0_2 = arith.constant 0 : index
    %c0_3 = arith.constant 0 : index
    %4 = vector.load %arg1[%c0_2, %c0_3] : memref<64x16xbf16, #tpu.memory_space<vmem>>, vector<64x16xbf16>
    %cst = arith.constant dense<0.000000e+00> : vector<128x16xf32>
    %5 = tpu.matmul %3, %4, %cst {dimension_numbers = #tpu.dot_dimension_numbers<[1], [0], [0], [1], [0, 0, 1, 1], [], []>} : vector<128x64xbf16>, vector<64x16xbf16>, vector<128x16xf32> -> vector<128x16xf32>
    %c0_4 = arith.constant 0 : index
    %c0_5 = arith.constant 0 : index
    %6 = vector.load %arg6[%c0_4, %c0_5] : memref<128x1xf32, #tpu.memory_space<vmem>>, vector<128x1xf32>
    %7 = vector.broadcast %6 : vector<128x1xf32> to vector<128x16xf32>
    %8 = arith.addf %5, %7 : vector<128x16xf32>
    %9 = vector.extract_strided_slice %8 {offsets = [32, 0], sizes = [1, 16], strides = [1, 1]} : vector<128x16xf32> to vector<1x16xf32>
    %10 = arith.negf %9 : vector<1x16xf32>
    %11 = math.exp %10 : vector<1x16xf32>
    %cst_6 = arith.constant 1.000000e+00 : f32
    %12 = vector.broadcast %cst_6 : f32 to vector<1x16xf32>
    %13 = arith.addf %12, %11 : vector<1x16xf32>
    %14 = arith.divf %12, %13 : vector<1x16xf32>
    %c0_7 = arith.constant 0 : index
    %c0_8 = arith.constant 0 : index
    %15 = vector.load %arg7[%c0_7, %c0_8] : memref<1x16xf32, #tpu.memory_space<vmem>>, vector<1x16xf32>
    tpu.vector_store %arg7[%c0_7, %c0_8], %14 {strides = array<i32>} : memref<1x16xf32, #tpu.memory_space<vmem>>, vector<1x16xf32>,
    %cst_9 = arith.constant 0.000000e+00 : f32
    %16 = vector.broadcast %cst_9 : f32 to vector<1x16xf32>
    %17 = arith.cmpf ogt, %14, %16 : vector<1x16xf32>
    %cst_10 = arith.constant 0.000000e+00 : f32
    %cst_11 = arith.constant -1.000000e+30 : f32
    %18 = vector.broadcast %cst_10 : f32 to vector<1x16xf32>
    %19 = vector.broadcast %cst_11 : f32 to vector<1x16xf32>
    %20 = arith.select %17, %18, %19 : vector<1x16xi1>, vector<1x16xf32>
    %21 = tpu.iota {dimensions = array<i32: 0>} : vector<128x16xi32>
    %c32_i32 = arith.constant 32 : i32
    %22 = vector.broadcast %c32_i32 : i32 to vector<128x16xi32>
    %23 = arith.cmpi eq, %21, %22 : vector<128x16xi32>
    %c33_i32 = arith.constant 33 : i32
    %24 = vector.broadcast %c33_i32 : i32 to vector<128x16xi32>
    %25 = arith.cmpi eq, %21, %24 : vector<128x16xi32>
    %26 = vector.shape_cast %20 : vector<1x16xf32> to vector<1x16xf32>
    %27 = vector.broadcast %26 : vector<1x16xf32> to vector<128x16xf32>
    %28 = arith.select %25, %27, %8 : vector<128x16xi1>, vector<128x16xf32>
    %cst_12 = arith.constant 1.000000e+00 : f32
    %29 = vector.broadcast %cst_12 : f32 to vector<128x16xf32>
    %30 = arith.select %23, %29, %28 : vector<128x16xi1>, vector<128x16xf32>
    %c0_13 = arith.constant 0 : index
    %c0_14 = arith.constant 0 : index
    %31 = vector.load %arg10[%c0_13, %c0_14] : memref<16x128xbf16, #tpu.memory_space<vmem>>, vector<16x128xbf16>
    %32 = arith.truncf %30 : vector<128x16xf32> to vector<128x16xbf16>
    %cst_15 = arith.constant dense<0.000000e+00> : vector<16x16xf32>
    %33 = tpu.matmul %31, %32, %cst_15 {dimension_numbers = #tpu.dot_dimension_numbers<[1], [0], [0], [1], [0, 0, 1, 1], [], []>} : vector<16x128xbf16>, vector<128x16xbf16>, vector<16x16xf32> -> vector<16x16xf32>
    %cst_16 = arith.constant dense<0xFF800000> : vector<16xf32>
    %34 = vector.multi_reduction <maximumf>, %33, %cst_16 [0] : vector<16x16xf32> to vector<16xf32>
    %35 = vector.shape_cast %34 : vector<16xf32> to vector<1x16xf32>
    %36 = tpu.iota {dimensions = array<i32: 0>} : vector<16x16xi32>
    %37 = vector.broadcast %35 : vector<1x16xf32> to vector<16x16xf32>
    %38 = arith.cmpf oeq, %33, %37 : vector<16x16xf32>
    %c16_i32 = arith.constant 16 : i32
    %39 = vector.broadcast %c16_i32 : i32 to vector<16x16xi32>
    %40 = arith.select %38, %36, %39 : vector<16x16xi1>, vector<16x16xi32>
    %cst_17 = arith.constant dense<2147483647> : vector<16xi32>
    %41 = vector.multi_reduction <minsi>, %40, %cst_17 [0] : vector<16x16xi32> to vector<16xi32>
    %42 = vector.shape_cast %41 : vector<16xi32> to vector<1x16xi32>
    %c0_18 = arith.constant 0 : index
    %c0_19 = arith.constant 0 : index
    %43 = vector.load %arg11[%c0_18, %c0_19] : memref<16x1xf32, #tpu.memory_space<vmem>>, vector<16x1xf32>
    %cst_20 = arith.constant dense<0xFF800000> : vector<16xf32>
    %44 = vector.multi_reduction <maximumf>, %33, %cst_20 [1] : vector<16x16xf32> to vector<16xf32>
    %45 = vector.shape_cast %44 : vector<16xf32> to vector<16x1xf32>
    %46 = arith.maximumf %43, %45 : vector<16x1xf32>
    %c0_21 = arith.constant 0 : index
    %c0_22 = arith.constant 0 : index
    %47 = vector.load %arg11[%c0_21, %c0_22] : memref<16x1xf32, #tpu.memory_space<vmem>>, vector<16x1xf32>
    tpu.vector_store %arg11[%c0_21, %c0_22], %46 {strides = array<i32>} : memref<16x1xf32, #tpu.memory_space<vmem>>, vector<16x1xf32>,
    %48 = arith.index_cast %arg0 : i32 to index
    %c0_23 = arith.constant 0 : index
    %49 = vector.load %arg12[%48, %c0_23] : memref<1x16xf32, #tpu.memory_space<vmem>>, vector<1x16xf32>
    tpu.vector_store %arg12[%48, %c0_23], %35 {strides = array<i32>} : memref<1x16xf32, #tpu.memory_space<vmem>>, vector<1x16xf32>,
    %50 = arith.index_cast %arg0 : i32 to index
    %c0_24 = arith.constant 0 : index
    %51 = vector.load %arg13[%50, %c0_24] : memref<1x16xi32, #tpu.memory_space<vmem>>, vector<1x16xi32>
    tpu.vector_store %arg13[%50, %c0_24], %42 {strides = array<i32>} : memref<1x16xi32, #tpu.memory_space<vmem>>, vector<1x16xi32>,
    %c0_i32_25 = arith.constant 0 : i32
    %52 = arith.cmpi eq, %arg0, %c0_i32_25 : i32
    %53 = arith.extui %52 : i1 to i32
    %c0_i32_26 = arith.constant 0 : i32
    %54 = arith.cmpi ne, %53, %c0_i32_26 : i32
    scf.if %54 {
      %c0_27 = arith.constant 0 : index
      %c0_28 = arith.constant 0 : index
      %55 = vector.load %arg11[%c0_27, %c0_28] : memref<16x1xf32, #tpu.memory_space<vmem>>, vector<16x1xf32>
      %c0_29 = arith.constant 0 : index
      %c0_30 = arith.constant 0 : index
      %56 = vector.load %arg12[%c0_29, %c0_30] : memref<1x16xf32, #tpu.memory_space<vmem>>, vector<1x16xf32>
      %c0_31 = arith.constant 0 : index
      %c0_32 = arith.constant 0 : index
      %57 = vector.load %arg13[%c0_31, %c0_32] : memref<1x16xi32, #tpu.memory_space<vmem>>, vector<1x16xi32>
      %58 = tpu.iota {dimensions = array<i32: 0>} : vector<16x16xi32>
      %59 = vector.broadcast %57 : vector<1x16xi32> to vector<16x16xi32>
      %60 = arith.cmpi eq, %58, %59 : vector<16x16xi32>
      %cst_33 = arith.constant 0.000000e+00 : f32
      %61 = vector.shape_cast %55 : vector<16x1xf32> to vector<16x1xf32>
      %62 = vector.broadcast %61 : vector<16x1xf32> to vector<16x16xf32>
      %63 = vector.broadcast %cst_33 : f32 to vector<16x16xf32>
      %64 = arith.select %60, %62, %63 : vector<16x16xi1>, vector<16x16xf32>
      %cst_34 = arith.constant dense<0.000000e+00> : vector<16xf32>
      %65 = vector.multi_reduction <add>, %64, %cst_34 [0] : vector<16x16xf32> to vector<16xf32>
      %66 = vector.shape_cast %65 : vector<16xf32> to vector<1x16xf32>
      %cst_35 = arith.constant 0.000000e+00 : f32
      %67 = vector.broadcast %cst_35 : f32 to vector<1x16xf32>
      %68 = arith.cmpf ogt, %56, %67 : vector<1x16xf32>
      %69 = arith.cmpf oge, %56, %66 : vector<1x16xf32>
      %70 = arith.andi %68, %69 : vector<1x16xi1>
      %c-1_i32 = arith.constant -1 : i32
      %71 = vector.broadcast %c-1_i32 : i32 to vector<1x16xi32>
      %72 = arith.select %70, %57, %71 : vector<1x16xi1>, vector<1x16xi32>
      %c0_36 = arith.constant 0 : index
      %c0_37 = arith.constant 0 : index
      %73 = vector.load %arg9[%c0_36, %c0_37] : memref<1x16xi32, #tpu.memory_space<vmem>>, vector<1x16xi32>
      tpu.vector_store %arg9[%c0_36, %c0_37], %72 {strides = array<i32>} : memref<1x16xi32, #tpu.memory_space<vmem>>, vector<1x16xi32>,
    } else {
    }
    return
  }
  func.func @transform_0(%arg0: i32) -> (i32, i32) {
    %c0_i32 = arith.constant 0 : i32
    %c0_i32_0 = arith.constant 0 : i32
    return %c0_i32, %arg0 : i32, i32
  }
  func.func @transform_1(%arg0: i32) -> (i32, i32) {
    %c0_i32 = arith.constant 0 : i32
    %c0_i32_0 = arith.constant 0 : i32
    %c0_i32_1 = arith.constant 0 : i32
    return %c0_i32, %c0_i32_0 : i32, i32
  }
  func.func @transform_2(%arg0: i32) -> (i32, i32) {
    %c0_i32 = arith.constant 0 : i32
    %c0_i32_0 = arith.constant 0 : i32
    %c0_i32_1 = arith.constant 0 : i32
    return %c0_i32, %c0_i32_0 : i32, i32
  }
  func.func @transform_3(%arg0: i32) -> (i32, i32) {
    %c0_i32 = arith.constant 0 : i32
    %c0_i32_0 = arith.constant 0 : i32
    %c0_i32_1 = arith.constant 0 : i32
    return %c0_i32, %c0_i32_0 : i32, i32
  }
  func.func @transform_4(%arg0: i32) -> (i32, i32) {
    %c0_i32 = arith.constant 0 : i32
    %c0_i32_0 = arith.constant 0 : i32
    %c0_i32_1 = arith.constant 0 : i32
    return %c0_i32, %c0_i32_0 : i32, i32
  }
  func.func @transform_5(%arg0: i32) -> (i32, i32) {
    %c0_i32 = arith.constant 0 : i32
    %c0_i32_0 = arith.constant 0 : i32
    %c0_i32_1 = arith.constant 0 : i32
    return %c0_i32, %c0_i32_0 : i32, i32
  }
  func.func @transform_6(%arg0: i32) -> (i32, i32) {
    %c0_i32 = arith.constant 0 : i32
    %c0_i32_0 = arith.constant 0 : i32
    return %c0_i32, %arg0 : i32, i32
  }
  func.func @transform_7(%arg0: i32) -> (i32, i32) {
    %c0_i32 = arith.constant 0 : i32
    %c0_i32_0 = arith.constant 0 : i32
    %c0_i32_1 = arith.constant 0 : i32
    return %c0_i32, %c0_i32_0 : i32, i32
  }
  func.func @transform_8(%arg0: i32) -> (i32, i32) {
    %c0_i32 = arith.constant 0 : i32
    %c0_i32_0 = arith.constant 0 : i32
    %c0_i32_1 = arith.constant 0 : i32
    return %c0_i32, %c0_i32_0 : i32, i32
  }
}

</mosaic_0001>

<llo_original>
// kernel: tpu_custom_call.1
$region0: #{tpu_custom_call.1}
  #allocation0 [shape = 'u32[]', space=smem, size = 0x4, offset = 0x4, fixed_abs, tag = 'smem constant byte address 0x4 - core index']
  #allocation1 [shape = 'u32[144,128]{1,0:T(1,128)}', space=vmem, size = 0x12000, scoped, tag = 'internal scratch']
  #allocation2 [shape = 'bf16[16,128]{1,0:T(8,128)(2,1)}', space=vmem, size = 0x1000, scoped, tag = 'scratch operand']
  #allocation3 [shape = 'f32[16,1]{1,0:T(8,128)}', space=vmem, size = 0x2000, scoped, tag = 'scratch operand']
  #allocation4 [shape = 'f32[1,16]{1,0:T(1,128)}', space=vmem, size = 0x200, scoped, tag = 'scratch operand']
  #allocation5 [shape = 's32[1,16]{1,0:T(1,128)}', space=vmem, size = 0x200, scoped, tag = 'scratch operand']
  %s0 = inlined_call_operand.vmem [shape: bf16[64,16], index: 0, kind: input, shape index: {}]
  %s1 = inlined_call_operand.vmem [shape: bf16[16,64], index: 1, kind: input, shape index: {}]
  %s2 = inlined_call_operand.vmem [shape: bf16[64,128], index: 2, kind: input, shape index: {}]
  %s3 = inlined_call_operand.vmem [shape: bf16[128,64], index: 3, kind: input, shape index: {}]
  %s4 = inlined_call_operand.vmem [shape: f32[1,128], index: 4, kind: input, shape index: {}]
  %s5 = inlined_call_operand.vmem [shape: f32[128,1], index: 5, kind: input, shape index: {}]
  %s6 = inlined_call_operand.hbm [shape: f32[1,16], index: 6, kind: output, shape index: {0}]
  %s7 = inlined_call_operand.vmem [shape: f32[16,1], index: 7, kind: output, shape index: {1}]
  %s8 = inlined_call_operand.hbm [shape: s32[1,16], index: 8, kind: output, shape index: {2}]
  %9 = xla_tuple %s6, %s7, %s8
  %s10 = sld [smem:[#allocation0]]
  $region58: #{tpu_custom_call.1} parent=0
    _
  %s12 = ssub.s32 1, %s10
  %s13 = scalar_select 0, %s12, %s10
  $region1: #{tpu_custom_call.1} parent=0
    #allocation6 [shape = 'u8[512]{0}', space=vmem, size = 0x400, scoped, tag = 'output window, operand 0, single buffered']
    #allocation7 [shape = 's32[1]{0}', space=sflag, size = 0x4, scoped, tag = 'scoped memory for tpu_custom_call.1']
    #allocation8 [shape = 'u8[512]{0}', space=vmem, size = 0x400, scoped, tag = 'output window, operand 2, single buffered']
    #allocation9 [shape = 's32[1]{0}', space=sflag, size = 0x4, scoped, tag = 'scoped memory for tpu_custom_call.1']
    %14 = vsyncpa [#allocation7], 0
    %15 = vsyncpa [#allocation9], 0
    // Predicated region
    $region2: #{tpu_custom_call.1} parent=1 // pred_check
      _
    $region3: #{tpu_custom_call.1} parent=1 // pred_check_branch
      %17 = sbr.rel (0) target = $region5
    $region4: #{tpu_custom_call.1} parent=1 // pred_region
      _
    $region5: #{tpu_custom_call.1} parent=1 // pred_fallthru
      _
    // Predicated region
    $region6: #{tpu_custom_call.1} parent=1 // pred_check
      _
    $region7: #{tpu_custom_call.1} parent=1 // pred_check_branch
      %19 = sbr.rel (0) target = $region9
    $region8: #{tpu_custom_call.1} parent=1 // pred_region
      _
    $region9: #{tpu_custom_call.1} parent=1 // pred_fallthru
      _
    // Predicated region
    $region10: #{tpu_custom_call.1} parent=1 // pred_check
      _
    $region11: #{tpu_custom_call.1} parent=1 // pred_check_branch
      %21 = sbr.rel (0) target = $region13
    $region12: #{tpu_custom_call.1} parent=1 // pred_region
      _
    $region13: #{tpu_custom_call.1} parent=1 // pred_fallthru
      _
    // Predicated region
    $region14: #{tpu_custom_call.1} parent=1 // pred_check
      _
    $region15: #{tpu_custom_call.1} parent=1 // pred_check_branch
      %23 = sbr.rel (0) target = $region17
    $region16: #{tpu_custom_call.1} parent=1 // pred_region
      _
    $region17: #{tpu_custom_call.1} parent=1 // pred_fallthru
      _
    // Predicated region
    $region18: #{tpu_custom_call.1} parent=1 // pred_check
      _
    $region19: #{tpu_custom_call.1} parent=1 // pred_check_branch
      %25 = sbr.rel (0) target = $region21
    $region20: #{tpu_custom_call.1} parent=1 // pred_region
      _
    $region21: #{tpu_custom_call.1} parent=1 // pred_fallthru
      _
    // Predicated region
    $region22: #{tpu_custom_call.1} parent=1 // pred_check
      _
    $region23: #{tpu_custom_call.1} parent=1 // pred_check_branch
      %27 = sbr.rel (0) target = $region25
    $region24: #{tpu_custom_call.1} parent=1 // pred_region
      _
    $region25: #{tpu_custom_call.1} parent=1 // pred_fallthru
      _
    %p29 = scmp.eq.s32.totalorder 0, 0
    // Predicated region
    $region26: #{tpu_custom_call.1} parent=1 // pred_check
      %p30 = pneg %p29
    $region27: #{tpu_custom_call.1} parent=1 // pred_check_branch
      %32 = sbr.rel (%p30) target = $region29
    $region28: #{tpu_custom_call.1} parent=1 // pred_region
      %v33 = vld [vmem:[%s1] sm:$0xf]
      %v34 = vld [vmem:[%s1 + $0x4] sm:$0xf]
      %v35 = vld [vmem:[%s2] sm:$0xf]
      %v36 = vld [vmem:[%s2 + $0x4] sm:$0xf]
      %v37 = vld [vmem:[%s2 + $0x8] sm:$0xf]
      %v38 = vld [vmem:[%s2 + $0xc] sm:$0xf]
      %v39 = vld [vmem:[%s2 + $0x10] sm:$0xf]
      %v40 = vld [vmem:[%s2 + $0x14] sm:$0xf]
      %v41 = vld [vmem:[%s2 + $0x18] sm:$0xf]
      %v42 = vld [vmem:[%s2 + $0x1c] sm:$0xf]
      %v43 = vld [vmem:[%s4] sm:$0x1]
      %v45 = vlaneseq
      %v46 = vshrl.u32 %v45, 7
      %v47 = vsub.s32 0, %v46
      %v48 = vrot.slane %v43, %v47
      %v52 = vunpack.c.l.b16 %v33
      %v53 = vunpack.c.l.b16 %v34
      %v54 = vpack.c.b16 %v53, %v52
      %v63 = vunpack.c.l.b16 %v35
      %v64 = vunpack.c.l.b16 %v36
      %v65 = vunpack.c.l.b16 %v37
      %v66 = vunpack.c.l.b16 %v38
      %v67 = vunpack.c.l.b16 %v39
      %v68 = vunpack.c.l.b16 %v40
      %v69 = vunpack.c.l.b16 %v41
      %v70 = vunpack.c.l.b16 %v42
      %v71 = vpack.c.b16 %v64, %v63
      %v72 = vpack.c.b16 %v66, %v65
      %v73 = vpack.c.b16 %v68, %v67
      %v74 = vpack.c.b16 %v70, %v69
      %vm79 = vcmask 523264
      %v81 = vsel %vm79, %v54, 0
      %83 = vmatprep.subr.bf16.mxu0 0
      %84 = vmatpush1.bf16.msra.mxu0 0
      %85 = vmatprep.subr.bf16.mxu0 0
      %86 = vmatpush1.bf16.msra.mxu0 0
      %87 = vmatprep.subr.bf16.mxu0 0
      %88 = vmatpush1.bf16.msra.mxu0 0
      %89 = vmatprep.subr.bf16.mxu0 0
      %90 = vmatpush1.bf16.msra.mxu0 0
      %91 = vmatprep.subr.bf16.mxu0 0
      %92 = vmatpush1.bf16.msra.mxu0 %v74
      %93 = vmatprep.subr.bf16.mxu0 0
      %94 = vmatpush1.bf16.msra.mxu0 %v73
      %95 = vmatprep.subr.bf16.mxu0 0
      %96 = vmatpush1.bf16.msra.mxu0 %v72
      %97 = vmatprep.subr.bf16.mxu0 0
      %98 = vmatpush1.bf16.msra.mxu0 %v71
      %99 = vmatprep.subr.bf16.mxu0 0
      %100 = vmatpush2.bf16.msra.mxu0 0
      %101 = vmatprep.subr.bf16.mxu0 0
      %102 = vmatpush2.bf16.msra.mxu0 0
      %103 = vmatprep.subr.bf16.mxu0 0
      %104 = vmatpush2.bf16.msra.mxu0 0
      %105 = vmatprep.subr.bf16.mxu0 0
      %106 = vmatpush2.bf16.msra.mxu0 0
      %107 = vmatprep.subr.bf16.mxu0 0
      %108 = vmatpush2.bf16.msra.mxu0 0
      %109 = vmatprep.subr.bf16.mxu0 0
      %110 = vmatpush2.bf16.msra.mxu0 0
      %111 = vmatprep.subr.bf16.mxu0 0
      %112 = vmatpush2.bf16.msra.mxu0 0
      %113 = vmatprep.subr.bf16.mxu0 0
      %114 = vmatpush2.bf16.msra.mxu0 0
      %115 = vmatprep.mubr.bf16.mxu0 0
      %116 = vmatmul.mubr.bf16.gmra.mxu0 %v81
      %v117 = vpop.f32.mrf.mxu0
      %v118 = vadd.f32 %v48, %v117
      %v119 = vpop.f32.mrf.mxu0
      %v120 = vpop.f32.mrf.mxu0
      %v121 = vadd.f32 %v48, %v120
      %v122 = vpop.f32.mrf.mxu0
      %123 = vdwg.mxu0
      %v124 = vxor.u32 %v118, 2147483648
      %v125 = vxor.u32 %v121, 2147483648
      %v126 = vmul.f32 %v124, 1.442695
      %v127 = vpow.pop %v126
      %v128 = vmul.f32 %v125, 1.442695
      %v129 = vpow.pop %v128
      %v130 = vadd.f32 %v127, 1.0
      %v131 = vadd.f32 %v129, 1.0
      %v132 = vrcp.pop %v130
      %v133 = vmul.f32 1.0, %v132
      %v134 = vrcp.pop %v131
      %v135 = vmul.f32 1.0, %v134
      %138 = vrot.lane.b32.xlu0 %v133, 96
      %v139 = vpop.permute.xlu0 %138
      %140 = vrot.lane.b32.xlu0 %v135, 96
      %v141 = vpop.permute.xlu0 %140
      %vm144 = vcmask 7168
      %145 = vst.msk [vmem:[%s7] sm:$0xff] %vm144, %v139
      %146 = vst.msk [vmem:[%s7 + $0x8] sm:$0xff] %vm144, %v141
      %vm147 = vcmp.gt.f32.partialorder %v133, 0.0
      %vm148 = vcmp.gt.f32.partialorder %v135, 0.0
      %v149 = vsel %vm147, 0.0, -1e+30
      %v150 = vsel %vm148, 0.0, -1e+30
      %v151 = vlaneseq
      %v152 = vand.u32 %v151, 127
      %vm153 = vcmp.eq.s32.totalorder %v152, 32
      %vm154 = vcmp.eq.s32.totalorder %v152, 33
      %v155 = vsel %vm154, 1.0, %v118
      %v156 = vsel %vm154, 1.0, %v121
      %158 = vset.pattern.permute.xlu0 32
      %159 = vperm.xlu0 %158, %v149
      %v160 = vpop.permute.xlu0 %159
      %163 = vset.pattern.permute.xlu0 32
      %164 = vperm.xlu0 %163, %v150
      %v165 = vpop.permute.xlu0 %164
      %v167 = vsel %vm153, %v160, %v155
      %v168 = vsel %vm153, %v165, %v156
      %v169 = vpack.c.bf16 %v168, %v167
      %v171 = vunpack.c.l.b16 %v169
      %v172 = vunpack.c.h.b16 %v169
      %v173 = vpack.c.b16 %v171, %v171
      %v174 = vpack.c.b16 %v172, %v172
      %177 = vst [vmem:[#allocation2] sm:$0xf] %v173
      %178 = vst [vmem:[#allocation2 + $0x4] sm:$0xf] %v174
      %179 = vst.msk [vmem:[#allocation3] sm:$0xff] %vm144, -3e+38
      %180 = vst.msk [vmem:[#allocation3 + $0x8] sm:$0xff] %vm144, -3e+38
    $region29: #{tpu_custom_call.1} parent=1 // pred_fallthru
      _
    %v181 = vld [vmem:[%s3] sm:$0xf]
    %v182 = vld [vmem:[%s3 + $0x4] sm:$0xf]
    %v183 = vld [vmem:[%s3 + $0x8] sm:$0xf]
    %v184 = vld [vmem:[%s3 + $0xc] sm:$0xf]
    %v185 = vld [vmem:[%s3 + $0x10] sm:$0xf]
    %v186 = vld [vmem:[%s3 + $0x14] sm:$0xf]
    %v187 = vld [vmem:[%s3 + $0x18] sm:$0xf]
    %v188 = vld [vmem:[%s3 + $0x1c] sm:$0xf]
    %v189 = vld [vmem:[%s3 + $0x20] sm:$0xf]
    %v190 = vld [vmem:[%s3 + $0x24] sm:$0xf]
    %v191 = vld [vmem:[%s3 + $0x28] sm:$0xf]
    %v192 = vld [vmem:[%s3 + $0x2c] sm:$0xf]
    %v193 = vld [vmem:[%s3 + $0x30] sm:$0xf]
    %v194 = vld [vmem:[%s3 + $0x34] sm:$0xf]
    %v195 = vld [vmem:[%s3 + $0x38] sm:$0xf]
    %v196 = vld [vmem:[%s3 + $0x3c] sm:$0xf]
    %v197 = vld [vmem:[%s0] sm:$0xf]
    %v198 = vld [vmem:[%s0 + $0x4] sm:$0xf]
    %v199 = vld [vmem:[%s0 + $0x8] sm:$0xf]
    %v200 = vld [vmem:[%s0 + $0xc] sm:$0xf]
    %v201 = vld [vmem:[%s0 + $0x10] sm:$0xf]
    %v202 = vld [vmem:[%s0 + $0x14] sm:$0xf]
    %v203 = vld [vmem:[%s0 + $0x18] sm:$0xf]
    %v204 = vld [vmem:[%s0 + $0x1c] sm:$0xf]
    %v205 = vld [vmem:[%s5] sm:$0xff]
    %v206 = vld [vmem:[%s5 + $0x8] sm:$0xff]
    %v207 = vld [vmem:[%s5 + $0x10] sm:$0xff]
    %v208 = vld [vmem:[%s5 + $0x18] sm:$0xff]
    %v209 = vld [vmem:[%s5 + $0x20] sm:$0xff]
    %v210 = vld [vmem:[%s5 + $0x28] sm:$0xff]
    %v211 = vld [vmem:[%s5 + $0x30] sm:$0xff]
    %v212 = vld [vmem:[%s5 + $0x38] sm:$0xff]
    %v213 = vld [vmem:[%s5 + $0x40] sm:$0xff]
    %v214 = vld [vmem:[%s5 + $0x48] sm:$0xff]
    %v215 = vld [vmem:[%s5 + $0x50] sm:$0xff]
    %v216 = vld [vmem:[%s5 + $0x58] sm:$0xff]
    %v217 = vld [vmem:[%s5 + $0x60] sm:$0xff]
    %v218 = vld [vmem:[%s5 + $0x68] sm:$0xff]
    %v219 = vld [vmem:[%s5 + $0x70] sm:$0xff]
    %v220 = vld [vmem:[%s5 + $0x78] sm:$0xff]
    %222 = vset.pattern.permute.xlu0 0
    %223 = vperm.xlu0 %222, %v205
    %v224 = vpop.permute.xlu0 %223
    %227 = vset.pattern.permute.xlu0 0
    %228 = vperm.xlu0 %227, %v206
    %v229 = vpop.permute.xlu0 %228
    %232 = vset.pattern.permute.xlu0 0
    %233 = vperm.xlu0 %232, %v207
    %v234 = vpop.permute.xlu0 %233
    %237 = vset.pattern.permute.xlu0 0
    %238 = vperm.xlu0 %237, %v208
    %v239 = vpop.permute.xlu0 %238
    %242 = vset.pattern.permute.xlu0 0
    %243 = vperm.xlu0 %242, %v209
    %v244 = vpop.permute.xlu0 %243
    %247 = vset.pattern.permute.xlu0 0
    %248 = vperm.xlu0 %247, %v210
    %v249 = vpop.permute.xlu0 %248
    %252 = vset.pattern.permute.xlu0 0
    %253 = vperm.xlu0 %252, %v211
    %v254 = vpop.permute.xlu0 %253
    %257 = vset.pattern.permute.xlu0 0
    %258 = vperm.xlu0 %257, %v212
    %v259 = vpop.permute.xlu0 %258
    %262 = vset.pattern.permute.xlu0 0
    %263 = vperm.xlu0 %262, %v213
    %v264 = vpop.permute.xlu0 %263
    %267 = vset.pattern.permute.xlu0 0
    %268 = vperm.xlu0 %267, %v214
    %v269 = vpop.permute.xlu0 %268
    %272 = vset.pattern.permute.xlu0 0
    %273 = vperm.xlu0 %272, %v215
    %v274 = vpop.permute.xlu0 %273
    %277 = vset.pattern.permute.xlu0 0
    %278 = vperm.xlu0 %277, %v216
    %v279 = vpop.permute.xlu0 %278
    %282 = vset.pattern.permute.xlu0 0
    %283 = vperm.xlu0 %282, %v217
    %v284 = vpop.permute.xlu0 %283
    %287 = vset.pattern.permute.xlu0 0
    %288 = vperm.xlu0 %287, %v218
    %v289 = vpop.permute.xlu0 %288
    %292 = vset.pattern.permute.xlu0 0
    %293 = vperm.xlu0 %292, %v219
    %v294 = vpop.permute.xlu0 %293
    %297 = vset.pattern.permute.xlu0 0
    %298 = vperm.xlu0 %297, %v220
    %v299 = vpop.permute.xlu0 %298
    %v317 = vunpack.c.l.b16 %v181
    %v318 = vunpack.c.l.b16 %v182
    %v319 = vunpack.c.l.b16 %v183
    %v320 = vunpack.c.l.b16 %v184
    %v321 = vunpack.c.l.b16 %v185
    %v322 = vunpack.c.l.b16 %v186
    %v323 = vunpack.c.l.b16 %v187
    %v324 = vunpack.c.l.b16 %v188
    %v325 = vunpack.c.l.b16 %v189
    %v326 = vunpack.c.l.b16 %v190
    %v327 = vunpack.c.l.b16 %v191
    %v328 = vunpack.c.l.b16 %v192
    %v329 = vunpack.c.l.b16 %v193
    %v330 = vunpack.c.l.b16 %v194
    %v331 = vunpack.c.l.b16 %v195
    %v332 = vunpack.c.l.b16 %v196
    %v333 = vpack.c.b16 %v318, %v317
    %v334 = vpack.c.b16 %v320, %v319
    %v335 = vpack.c.b16 %v322, %v321
    %v336 = vpack.c.b16 %v324, %v323
    %v337 = vpack.c.b16 %v326, %v325
    %v338 = vpack.c.b16 %v328, %v327
    %v339 = vpack.c.b16 %v330, %v329
    %v340 = vpack.c.b16 %v332, %v331
    %v349 = vunpack.c.l.b16 %v197
    %v350 = vunpack.c.l.b16 %v198
    %v351 = vunpack.c.l.b16 %v199
    %v352 = vunpack.c.l.b16 %v200
    %v353 = vunpack.c.l.b16 %v201
    %v354 = vunpack.c.l.b16 %v202
    %v355 = vunpack.c.l.b16 %v203
    %v356 = vunpack.c.l.b16 %v204
    %v357 = vpack.c.b16 %v350, %v349
    %v358 = vpack.c.b16 %v352, %v351
    %v359 = vpack.c.b16 %v354, %v353
    %v360 = vpack.c.b16 %v356, %v355
    %vm365 = vcmask 523264
    %v367 = vsel %vm365, %v333, 0
    %v370 = vsel %vm365, %v334, 0
    %v373 = vsel %vm365, %v335, 0
    %v376 = vsel %vm365, %v336, 0
    %v379 = vsel %vm365, %v337, 0
    %v382 = vsel %vm365, %v338, 0
    %v385 = vsel %vm365, %v339, 0
    %v388 = vsel %vm365, %v340, 0
    %390 = vmatprep.subr.bf16.mxu0 0
    %391 = vmatpush1.bf16.msra.mxu0 0
    %392 = vmatprep.subr.bf16.mxu0 0
    %393 = vmatpush1.bf16.msra.mxu0 0
    %394 = vmatprep.subr.bf16.mxu0 0
    %395 = vmatpush1.bf16.msra.mxu0 0
    %396 = vmatprep.subr.bf16.mxu0 0
    %397 = vmatpush1.bf16.msra.mxu0 0
    %398 = vmatprep.subr.bf16.mxu0 0
    %399 = vmatpush1.bf16.msra.mxu0 %v360
    %400 = vmatprep.subr.bf16.mxu0 0
    %401 = vmatpush1.bf16.msra.mxu0 %v359
    %402 = vmatprep.subr.bf16.mxu0 0
    %403 = vmatpush1.bf16.msra.mxu0 %v358
    %404 = vmatprep.subr.bf16.mxu0 0
    %405 = vmatpush1.bf16.msra.mxu0 %v357
    %406 = vmatprep.subr.bf16.mxu0 0
    %407 = vmatpush2.bf16.msra.mxu0 0
    %408 = vmatprep.subr.bf16.mxu0 0
    %409 = vmatpush2.bf16.msra.mxu0 0
    %410 = vmatprep.subr.bf16.mxu0 0
    %411 = vmatpush2.bf16.msra.mxu0 0
    %412 = vmatprep.subr.bf16.mxu0 0
    %413 = vmatpush2.bf16.msra.mxu0 0
    %414 = vmatprep.subr.bf16.mxu0 0
    %415 = vmatpush2.bf16.msra.mxu0 0
    %416 = vmatprep.subr.bf16.mxu0 0
    %417 = vmatpush2.bf16.msra.mxu0 0
    %418 = vmatprep.subr.bf16.mxu0 0
    %419 = vmatpush2.bf16.msra.mxu0 0
    %420 = vmatprep.subr.bf16.mxu0 0
    %421 = vmatpush2.bf16.msra.mxu0 0
    %422 = vmatprep.mubr.bf16.mxu0 0
    %423 = vmatmul.mubr.bf16.gmra.mxu0 %v367
    %v424 = vpop.f32.mrf.mxu0
    %v425 = vadd.f32 %v224, %v424
    %v426 = vpop.f32.mrf.mxu0
    %v427 = vpop.f32.mrf.mxu0
    %v428 = vadd.f32 %v229, %v427
    %v429 = vpop.f32.mrf.mxu0
    %430 = vmatprep.mubr.bf16.mxu0 0
    %431 = vmatmul.mubr.bf16.gmra.mxu0 %v370
    %v432 = vpop.f32.mrf.mxu0
    %v433 = vadd.f32 %v234, %v432
    %v434 = vpop.f32.mrf.mxu0
    %v435 = vpop.f32.mrf.mxu0
    %v436 = vadd.f32 %v239, %v435
    %v437 = vpop.f32.mrf.mxu0
    %438 = vmatprep.mubr.bf16.mxu0 0
    %439 = vmatmul.mubr.bf16.gmra.mxu0 %v373
    %v440 = vpop.f32.mrf.mxu0
    %v441 = vadd.f32 %v244, %v440
    %v442 = vpop.f32.mrf.mxu0
    %v443 = vpop.f32.mrf.mxu0
    %v444 = vadd.f32 %v249, %v443
    %v445 = vpop.f32.mrf.mxu0
    %446 = vmatprep.mubr.bf16.mxu0 0
    %447 = vmatmul.mubr.bf16.gmra.mxu0 %v376
    %v448 = vpop.f32.mrf.mxu0
    %v449 = vadd.f32 %v254, %v448
    %v450 = vpop.f32.mrf.mxu0
    %v451 = vpop.f32.mrf.mxu0
    %v452 = vadd.f32 %v259, %v451
    %v453 = vpop.f32.mrf.mxu0
    %454 = vmatprep.mubr.bf16.mxu0 0
    %455 = vmatmul.mubr.bf16.gmra.mxu0 %v379
    %v456 = vpop.f32.mrf.mxu0
    %v457 = vadd.f32 %v264, %v456
    %v458 = vpop.f32.mrf.mxu0
    %v459 = vpop.f32.mrf.mxu0
    %v460 = vadd.f32 %v269, %v459
    %v461 = vpop.f32.mrf.mxu0
    %462 = vmatprep.mubr.bf16.mxu0 0
    %463 = vmatmul.mubr.bf16.gmra.mxu0 %v382
    %v464 = vpop.f32.mrf.mxu0
    %v465 = vadd.f32 %v274, %v464
    %v466 = vpop.f32.mrf.mxu0
    %v467 = vpop.f32.mrf.mxu0
    %v468 = vadd.f32 %v279, %v467
    %v469 = vpop.f32.mrf.mxu0
    %470 = vmatprep.mubr.bf16.mxu0 0
    %471 = vmatmul.mubr.bf16.gmra.mxu0 %v385
    %v472 = vpop.f32.mrf.mxu0
    %v473 = vadd.f32 %v284, %v472
    %v474 = vpop.f32.mrf.mxu0
    %v475 = vpop.f32.mrf.mxu0
    %v476 = vadd.f32 %v289, %v475
    %v477 = vpop.f32.mrf.mxu0
    %478 = vmatprep.mubr.bf16.mxu0 0
    %479 = vmatmul.mubr.bf16.gmra.mxu0 %v388
    %v480 = vpop.f32.mrf.mxu0
    %v481 = vadd.f32 %v294, %v480
    %v482 = vpop.f32.mrf.mxu0
    %v483 = vpop.f32.mrf.mxu0
    %v484 = vadd.f32 %v299, %v483
    %v485 = vpop.f32.mrf.mxu0
    %486 = vdwg.mxu0
    %v487 = vxor.u32 %v441, 2147483648
    %v488 = vmul.f32 %v487, 1.442695
    %v489 = vpow.pop %v488
    %v490 = vadd.f32 %v489, 1.0
    %v491 = vrcp.pop %v490
    %v492 = vmul.f32 1.0, %v491
    %vm493 = vcmask 122880
    %494 = vst.msk [vmem:[#allocation6] sm:$0x1] %vm493, %v492
    %vm495 = vcmp.gt.f32.partialorder %v492, 0.0
    %v496 = vsel %vm495, 0.0, -1e+30
    %v497 = vlaneseq
    %v498 = vshrl.u32 %v497, 7
    %v499 = vadd.s32 %v498, 8
    %v500 = vadd.s32 %v498, 16
    %v501 = vadd.s32 %v498, 24
    %v502 = vadd.s32 %v498, 32
    %v503 = vadd.s32 %v498, 40
    %v504 = vadd.s32 %v498, 48
    %v505 = vadd.s32 %v498, 56
    %v506 = vadd.s32 %v498, 64
    %v507 = vadd.s32 %v498, 72
    %v508 = vadd.s32 %v498, 80
    %v509 = vadd.s32 %v498, 88
    %v510 = vadd.s32 %v498, 96
    %v511 = vadd.s32 %v498, 104
    %v512 = vadd.s32 %v498, 112
    %v513 = vadd.s32 %v498, 120
    %vm514 = vcmp.eq.s32.totalorder %v498, 32
    %vm515 = vcmp.eq.s32.totalorder %v499, 32
    %vm516 = vcmp.eq.s32.totalorder %v500, 32
    %vm517 = vcmp.eq.s32.totalorder %v501, 32
    %vm518 = vcmp.eq.s32.totalorder %v502, 32
    %vm519 = vcmp.eq.s32.totalorder %v503, 32
    %vm520 = vcmp.eq.s32.totalorder %v504, 32
    %vm521 = vcmp.eq.s32.totalorder %v505, 32
    %vm522 = vcmp.eq.s32.totalorder %v506, 32
    %vm523 = vcmp.eq.s32.totalorder %v507, 32
    %vm524 = vcmp.eq.s32.totalorder %v508, 32
    %vm525 = vcmp.eq.s32.totalorder %v509, 32
    %vm526 = vcmp.eq.s32.totalorder %v510, 32
    %vm527 = vcmp.eq.s32.totalorder %v511, 32
    %vm528 = vcmp.eq.s32.totalorder %v512, 32
    %vm529 = vcmp.eq.s32.totalorder %v513, 32
    %vm530 = vcmp.eq.s32.totalorder %v498, 33
    %vm531 = vcmp.eq.s32.totalorder %v499, 33
    %vm532 = vcmp.eq.s32.totalorder %v500, 33
    %vm533 = vcmp.eq.s32.totalorder %v501, 33
    %vm534 = vcmp.eq.s32.totalorder %v502, 33
    %vm535 = vcmp.eq.s32.totalorder %v503, 33
    %vm536 = vcmp.eq.s32.totalorder %v504, 33
    %vm537 = vcmp.eq.s32.totalorder %v505, 33
    %vm538 = vcmp.eq.s32.totalorder %v506, 33
    %vm539 = vcmp.eq.s32.totalorder %v507, 33
    %vm540 = vcmp.eq.s32.totalorder %v508, 33
    %vm541 = vcmp.eq.s32.totalorder %v509, 33
    %vm542 = vcmp.eq.s32.totalorder %v510, 33
    %vm543 = vcmp.eq.s32.totalorder %v511, 33
    %vm544 = vcmp.eq.s32.totalorder %v512, 33
    %vm545 = vcmp.eq.s32.totalorder %v513, 33
    %v546 = vlaneseq
    %v547 = vshrl.u32 %v546, 7
    %v548 = vsub.s32 0, %v547
    %v549 = vrot.slane %v496, %v548
    %v550 = vsel %vm530, %v549, %v425
    %v551 = vsel %vm531, %v549, %v428
    %v552 = vsel %vm532, %v549, %v433
    %v553 = vsel %vm533, %v549, %v436
    %v554 = vsel %vm534, %v549, %v441
    %v555 = vsel %vm535, %v549, %v444
    %v556 = vsel %vm536, %v549, %v449
    %v557 = vsel %vm537, %v549, %v452
    %v558 = vsel %vm538, %v549, %v457
    %v559 = vsel %vm539, %v549, %v460
    %v560 = vsel %vm540, %v549, %v465
    %v561 = vsel %vm541, %v549, %v468
    %v562 = vsel %vm542, %v549, %v473
    %v563 = vsel %vm543, %v549, %v476
    %v564 = vsel %vm544, %v549, %v481
    %v565 = vsel %vm545, %v549, %v484
    %v566 = vsel %vm514, 1.0, %v550
    %v567 = vsel %vm515, 1.0, %v551
    %v568 = vsel %vm516, 1.0, %v552
    %v569 = vsel %vm517, 1.0, %v553
    %v570 = vsel %vm518, 1.0, %v554
    %v571 = vsel %vm519, 1.0, %v555
    %v572 = vsel %vm520, 1.0, %v556
    %v573 = vsel %vm521, 1.0, %v557
    %v574 = vsel %vm522, 1.0, %v558
    %v575 = vsel %vm523, 1.0, %v559
    %v576 = vsel %vm524, 1.0, %v560
    %v577 = vsel %vm525, 1.0, %v561
    %v578 = vsel %vm526, 1.0, %v562
    %v579 = vsel %vm527, 1.0, %v563
    %v580 = vsel %vm528, 1.0, %v564
    %v581 = vsel %vm529, 1.0, %v565
    %v582 = vld [vmem:[#allocation2] sm:$0xf]
    %v583 = vld [vmem:[#allocation2 + $0x4] sm:$0xf]
    %v584 = vpack.c.bf16 %v567, %v566
    %v585 = vpack.c.bf16 %v569, %v568
    %v586 = vpack.c.bf16 %v571, %v570
    %v587 = vpack.c.bf16 %v573, %v572
    %v588 = vpack.c.bf16 %v575, %v574
    %v589 = vpack.c.bf16 %v577, %v576
    %v590 = vpack.c.bf16 %v579, %v578
    %v591 = vpack.c.bf16 %v581, %v580
    %v594 = vunpack.c.l.b16 %v582
    %v595 = vunpack.c.l.b16 %v583
    %v596 = vpack.c.b16 %v595, %v594
    %598 = vmatprep.subr.bf16.mxu0 0
    %599 = vmatpush1.bf16.msra.mxu0 %v591
    %600 = vmatprep.subr.bf16.mxu0 0
    %601 = vmatpush1.bf16.msra.mxu0 %v590
    %602 = vmatprep.subr.bf16.mxu0 0
    %603 = vmatpush1.bf16.msra.mxu0 %v589
    %604 = vmatprep.subr.bf16.mxu0 0
    %605 = vmatpush1.bf16.msra.mxu0 %v588
    %606 = vmatprep.subr.bf16.mxu0 0
    %607 = vmatpush1.bf16.msra.mxu0 %v587
    %608 = vmatprep.subr.bf16.mxu0 0
    %609 = vmatpush1.bf16.msra.mxu0 %v586
    %610 = vmatprep.subr.bf16.mxu0 0
    %611 = vmatpush1.bf16.msra.mxu0 %v585
    %612 = vmatprep.subr.bf16.mxu0 0
    %613 = vmatpush1.bf16.msra.mxu0 %v584
    %614 = vmatprep.subr.bf16.mxu0 0
    %615 = vmatpush2.bf16.msra.mxu0 0
    %616 = vmatprep.subr.bf16.mxu0 0
    %617 = vmatpush2.bf16.msra.mxu0 0
    %618 = vmatprep.subr.bf16.mxu0 0
    %619 = vmatpush2.bf16.msra.mxu0 0
    %620 = vmatprep.subr.bf16.mxu0 0
    %621 = vmatpush2.bf16.msra.mxu0 0
    %622 = vmatprep.subr.bf16.mxu0 0
    %623 = vmatpush2.bf16.msra.mxu0 0
    %624 = vmatprep.subr.bf16.mxu0 0
    %625 = vmatpush2.bf16.msra.mxu0 0
    %626 = vmatprep.subr.bf16.mxu0 0
    %627 = vmatpush2.bf16.msra.mxu0 0
    %628 = vmatprep.subr.bf16.mxu0 0
    %629 = vmatpush2.bf16.msra.mxu0 0
    %630 = vmatprep.mubr.bf16.mxu0 0
    %631 = vmatmul.mubr.bf16.gmra.mxu0 %v596
    %v632 = vpop.f32.mrf.mxu0
    %v633 = vadd.f32 0.0, %v632
    %v634 = vpop.f32.mrf.mxu0
    %v635 = vpop.f32.mrf.mxu0
    %v636 = vadd.f32 0.0, %v635
    %v637 = vpop.f32.mrf.mxu0
    %638 = vdwg.mxu0
    %vm639 = vcmask 130048
    %v640 = vsel %vm639, %v633, -inf
    %v641 = vsel %vm639, %v636, -inf
    %v642 = vmax.f32 %v640, %v641
    %v643 = vrot.slane %v642, 4
    %v644 = vmax.f32 %v642, %v643
    %v645 = vrot.slane %v644, 2
    %v646 = vmax.f32 %v644, %v645
    %v647 = vrot.slane %v646, 1
    %v648 = vmax.f32 %v646, %v647
    %vm649 = vcmp.eq.f32.partialorder %v633, %v648
    %vm650 = vcmp.eq.f32.partialorder %v636, %v648
    %v651 = vsel %vm649, %v498, 16
    %v652 = vsel %vm650, %v499, 16
    %v653 = vsel %vm639, %v651, 2147483647
    %v654 = vsel %vm639, %v652, 2147483647
    %vm655 = vcmp.lt.s32.totalorder %v653, %v654
    %v656 = vsel %vm655, %v653, %v654
    %v657 = vrot.slane %v656, 4
    %vm658 = vcmp.lt.s32.totalorder %v656, %v657
    %v659 = vsel %vm658, %v656, %v657
    %v660 = vrot.slane %v659, 2
    %vm661 = vcmp.lt.s32.totalorder %v659, %v660
    %v662 = vsel %vm661, %v659, %v660
    %v663 = vrot.slane %v662, 1
    %vm664 = vcmp.lt.s32.totalorder %v662, %v663
    %v665 = vsel %vm664, %v662, %v663
    %v666 = vld [vmem:[#allocation3] sm:$0xff]
    %v667 = vld [vmem:[#allocation3 + $0x8] sm:$0xff]
    %668 = vmax.xlane.f32.xlu0 %v640
    %v669 = vpop.xlane.xlu0 %668
    %670 = vmax.xlane.f32.xlu0 %v641
    %v671 = vpop.xlane.xlu0 %670
    %v672 = vmax.f32 %v666, %v669
    %v673 = vmax.f32 %v667, %v671
    %vm674 = vcmask 7168
    %675 = vst.msk [vmem:[#allocation3] sm:$0xff] %vm674, %v672
    %676 = vst.msk [vmem:[#allocation3 + $0x8] sm:$0xff] %vm674, %v673
    %677 = vst.msk [vmem:[#allocation4] sm:$0x1] %vm493, %v648
    %678 = vst.msk [vmem:[#allocation5] sm:$0x1] %vm493, %v665
    // Predicated region
    $region30: #{tpu_custom_call.1} parent=1 // pred_check
      %p679 = pneg %p29
    $region31: #{tpu_custom_call.1} parent=1 // pred_check_branch
      %681 = sbr.rel (%p679) target = $region33
    $region32: #{tpu_custom_call.1} parent=1 // pred_region
      %v682 = vld [vmem:[#allocation3] sm:$0xff]
      %v683 = vld [vmem:[#allocation3 + $0x8] sm:$0xff]
      %v684 = vld [vmem:[#allocation4] sm:$0x1]
      %v685 = vld [vmem:[#allocation5] sm:$0x1]
      %v686 = vlaneseq
      %v687 = vshrl.u32 %v686, 7
      %v688 = vsub.s32 0, %v687
      %v689 = vrot.slane %v685, %v688
      %vm690 = vcmp.eq.s32.totalorder %v498, %v689
      %vm691 = vcmp.eq.s32.totalorder %v499, %v689
      %693 = vset.pattern.permute.xlu0 0
      %694 = vperm.xlu0 %693, %v682
      %v695 = vpop.permute.xlu0 %694
      %698 = vset.pattern.permute.xlu0 0
      %699 = vperm.xlu0 %698, %v683
      %v700 = vpop.permute.xlu0 %699
      %v702 = vsel %vm690, %v695, 0.0
      %v703 = vsel %vm691, %v700, 0.0
      %v704 = vsel %vm639, %v702, 0.0
      %v705 = vsel %vm639, %v703, 0.0
      %v706 = vadd.f32 %v704, %v705
      %v707 = vrot.slane %v706, 4
      %v708 = vadd.f32 %v706, %v707
      %v709 = vrot.slane %v708, 2
      %v710 = vadd.f32 %v708, %v709
      %v711 = vrot.slane %v710, 1
      %v712 = vadd.f32 %v710, %v711
      %vm713 = vcmp.gt.f32.partialorder %v684, 0.0
      %vm714 = vcmp.ge.f32.partialorder %v684, %v712
      %vm715 = vmand %vm713, %vm714
      %v716 = vsel %vm715, %v685, 4294967295
      %717 = vst.msk [vmem:[#allocation8] sm:$0x1] %vm493, %v716
    $region33: #{tpu_custom_call.1} parent=1 // pred_fallthru
      _
    // Predicated region
    $region34: #{tpu_custom_call.1} parent=1 // pred_check
      _
    $region35: #{tpu_custom_call.1} parent=1 // pred_check_branch
      %719 = sbr.rel (0) target = $region37
    $region36: #{tpu_custom_call.1} parent=1 // pred_region
      %s721 = ssub.s32 16, 16
      %722 = vsyncadd [#allocation7], %s721
      %s724 = sshll.u32 [#allocation6], 4
      %s725 = int_to_ptr.vmem [resolvable:$true] %s724
      %727 = dma.vmem_to_hbm [thread:$0]  %s725, 16, %s6, [#allocation7]
    $region37: #{tpu_custom_call.1} parent=1 // pred_fallthru
      _
    // Predicated region
    $region38: #{tpu_custom_call.1} parent=1 // pred_check
      _
    $region39: #{tpu_custom_call.1} parent=1 // pred_check_branch
      %729 = sbr.rel (0) target = $region41
    $region40: #{tpu_custom_call.1} parent=1 // pred_region
      _
    $region41: #{tpu_custom_call.1} parent=1 // pred_fallthru
      _
    // Predicated region
    $region42: #{tpu_custom_call.1} parent=1 // pred_check
      _
    $region43: #{tpu_custom_call.1} parent=1 // pred_check_branch
      %731 = sbr.rel (0) target = $region45
    $region44: #{tpu_custom_call.1} parent=1 // pred_region
      %s733 = ssub.s32 16, 16
      %734 = vsyncadd [#allocation9], %s733
      %s736 = sshll.u32 [#allocation8], 4
      %s737 = int_to_ptr.vmem [resolvable:$true] %s736
      %739 = dma.vmem_to_hbm [thread:$0]  %s737, 16, %s8, [#allocation9]
    $region45: #{tpu_custom_call.1} parent=1 // pred_fallthru
      _
    // Predicated region
    $region46: #{tpu_custom_call.1} parent=1 // pred_check
      _
    $region47: #{tpu_custom_call.1} parent=1 // pred_check_branch
      %741 = sbr.rel (0) target = $region49
    $region48: #{tpu_custom_call.1} parent=1 // pred_region
      %742 = dma.done [#allocation7], 16
    $region49: #{tpu_custom_call.1} parent=1 // pred_fallthru
      _
    // Predicated region
    $region50: #{tpu_custom_call.1} parent=1 // pred_check
      _
    $region51: #{tpu_custom_call.1} parent=1 // pred_check_branch
      %744 = sbr.rel (0) target = $region53
    $region52: #{tpu_custom_call.1} parent=1 // pred_region
      _
    $region53: #{tpu_custom_call.1} parent=1 // pred_fallthru
      _
    // Predicated region
    $region54: #{tpu_custom_call.1} parent=1 // pred_check
      _
    $region55: #{tpu_custom_call.1} parent=1 // pred_check_branch
      %746 = sbr.rel (0) target = $region57
    $region56: #{tpu_custom_call.1} parent=1 // pred_region
      %747 = dma.done [#allocation9], 16
    $region57: #{tpu_custom_call.1} parent=1 // pred_fallthru
      _
    %748 = vsyncpa [#allocation7], 1
    %749 = vsyncpa [#allocation9], 1

</llo_original>
